<compile_context>
chip_gen: v5e
topology: v5e:2x2
jax: 0.10.0
libtpu: 0.0.40
codegen_flags: <defaults>
</compile_context>

<pallas_src>
import numpy as np
import jax
import jax.numpy as jnp
from jax import lax
from jax.experimental import pallas as pl
from jax.experimental.pallas import tpu as pltpu


N1 = 384          # conv1 expanded output width (288 real cols + 96 zero pad)
N_OUT_PAD = 128   # fc2 output padded from 4 -> 128 lanes


# ----------------------------------------------------------------------------
# Kernel: one batch tile per grid step; everything else is resident weights.
#   x_ref   : (TB, 16)    f32   flattened 4x4 boards
#   w1_ref  : (16, 384)   f32   conv1 expanded to a dense scatter matrix
#   b1_ref  : (1, 384)
#   w2_ref  : (384, 256)  f32   conv2 expanded to a dense scatter matrix
#   b2_ref  : (1, 256)
#   wf1_ref : (256, 128)  f32   fc1 (rows reordered to the kernel's NHWC layout)
#   bf1_ref : (1, 128)
#   wf2_ref : (128, 128)  f32   fc2, N padded 4 -> 128 with zeros
#   bf2_ref : (1, 128)
#   out_ref : (TB, 128)
# ----------------------------------------------------------------------------
def policy_cnn_kernel(x_ref, w1_ref, b1_ref, w2_ref, b2_ref,
                      wf1_ref, bf1_ref, wf2_ref, bf2_ref, out_ref):
    h = jnp.dot(x_ref[...], w1_ref[...],
                preferred_element_type=jnp.float32) + b1_ref[...]
    h = jnp.maximum(h, 0.0)                                   # conv1 + ReLU
    h = jnp.dot(h, w2_ref[...],
                preferred_element_type=jnp.float32) + b2_ref[...]
    h = jnp.maximum(h, 0.0)                                   # conv2 + ReLU
    h = jnp.dot(h, wf1_ref[...],
                preferred_element_type=jnp.float32) + bf1_ref[...]
    h = jnp.maximum(h, 0.0)                                   # fc1 + ReLU
    out_ref[...] = jnp.dot(h, wf2_ref[...],
                           preferred_element_type=jnp.float32) + bf2_ref[...]


# ----------------------------------------------------------------------------
# Glue: expand conv weights into dense scatter matmuls (PyTorch -> kernel).
# ----------------------------------------------------------------------------
def prep_params(conv1_w, conv1_b, conv2_w, conv2_b, fc1_w, fc1_b, fc2_w, fc2_b):
    f32 = jnp.float32

    # --- conv1: (B,16) @ (16, 288) ; col = p*32 + c, p = oi*3 + oj ----------
    # G1[in_idx, p, t] = 1 iff input pixel in_idx feeds tap t of patch p.
    G1 = np.zeros((16, 9, 4), np.float32)
    for oi in range(3):
        for oj in range(3):
            p = oi * 3 + oj
            for di in range(2):
                for dj in range(2):
                    G1[(oi + di) * 4 + (oj + dj), p, di * 2 + dj] = 1.0
    w1_taps = jnp.transpose(conv1_w, (2, 3, 1, 0)).reshape(4, 32)   # [t, c]
    w1_big = jnp.einsum('ipt,tc->ipc', jnp.asarray(G1), w1_taps).reshape(16, 288)
    b1_big = jnp.tile(conv1_b, 9)                                   # (288,)
    # pad 288 -> 384 (zero columns; ReLU(0)=0, multiplied by zero W2 rows)
    w1_big = jnp.pad(w1_big, ((0, 0), (0, N1 - 288)))
    b1_big = jnp.pad(b1_big, (0, N1 - 288))

    # --- conv2: (B,384) @ (384, 256) ; col = q*64 + c_out, q = i*2 + j ------
    G2 = np.zeros((9, 4, 4), np.float32)
    for i in range(2):
        for j in range(2):
            q = i * 2 + j
            for di in range(2):
                for dj in range(2):
                    G2[(i + di) * 3 + (j + dj), q, di * 2 + dj] = 1.0
    w2_taps = jnp.transpose(conv2_w, (2, 3, 1, 0)).reshape(4, 32, 64)  # [t,ci,co]
    w2_big = jnp.einsum('pqt,tio->piqo', jnp.asarray(G2), w2_taps).reshape(288, 256)
    w2_big = jnp.pad(w2_big, ((0, N1 - 288), (0, 0)))               # (384, 256)
    b2_big = jnp.tile(conv2_b, 4)                                   # (256,)

    # --- fc1: PyTorch flatten index = c*4 + i*2 + j  ->  kernel row = q*64+c
    wf1 = jnp.transpose(fc1_w.reshape(128, 64, 2, 2), (2, 3, 1, 0)).reshape(256, 128)

    # --- fc2: (4,128) -> (128,4) -> pad N to 128 ----------------------------
    wf2 = jnp.pad(jnp.transpose(fc2_w, (1, 0)), ((0, 0), (0, N_OUT_PAD - 4)))
    bf2 = jnp.pad(fc2_b, (0, N_OUT_PAD - 4))

    return (w1_big.astype(f32), b1_big.reshape(1, N1).astype(f32),
            w2_big.astype(f32), b2_big.reshape(1, 256).astype(f32),
            wf1.astype(f32), fc1_b.reshape(1, 128).astype(f32),
            wf2.astype(f32), bf2.reshape(1, N_OUT_PAD).astype(f32))


def policy_cnn_forward(x_nchw, kernel_params, *, max_tile=1024):
    """x_nchw: (B, 1, 4, 4) float32, PyTorch layout. Returns (B, 4)."""
    B = x_nchw.shape[0]
    x = x_nchw.reshape(B, 16).astype(jnp.float32)      # flatten: idx = i*4 + j

    tb = min(max_tile, ((B + 7) // 8) * 8)              # batch tile (mult. of 8)
    grid = (pl.cdiv(B, tb),)

    const = lambda i: (0, 0)                            # weights stay resident
    in_specs = [
        pl.BlockSpec((tb, 16), lambda i: (i, 0)),       # x: streamed per tile
        pl.BlockSpec((16, N1), const),
        pl.BlockSpec((1, N1), const),
        pl.BlockSpec((N1, 256), const),
        pl.BlockSpec((1, 256), const),
        pl.BlockSpec((256, 128), const),
        pl.BlockSpec((1, 128), const),
        pl.BlockSpec((128, N_OUT_PAD), const),
        pl.BlockSpec((1, N_OUT_PAD), const),
    ]
    out_specs = pl.BlockSpec((tb, N_OUT_PAD), lambda i: (i, 0))

    out_padded = pl.pallas_call(
        policy_cnn_kernel,
        out_shape=jax.ShapeDtypeStruct((B, N_OUT_PAD), jnp.float32),
        grid=grid,
        in_specs=in_specs,
        out_specs=out_specs,
        compiler_params=pltpu.CompilerParams(
            dimension_semantics=("parallel",)),         # v7x: split batch on 2 TCs
    )(x, *kernel_params)
    return out_padded[:, :4]                            # drop lane padding


# ----------------------------------------------------------------------------
# Pure-JAX reference (exact PyTorch semantics) for verification
# ----------------------------------------------------------------------------
def reference_forward(x_nchw, conv1_w, conv1_b, conv2_w, conv2_b,
                      fc1_w, fc1_b, fc2_w, fc2_b):
    dn = ('NCHW', 'OIHW', 'NCHW')
    y = lax.conv_general_dilated(x_nchw, conv1_w, (1, 1), 'VALID',
                                 dimension_numbers=dn)
    y = jnp.maximum(y + conv1_b.reshape(1, 32, 1, 1), 0.0)
    y = lax.conv_general_dilated(y, conv2_w, (1, 1), 'VALID',
                                 dimension_numbers=dn)
    y = jnp.maximum(y + conv2_b.reshape(1, 64, 1, 1), 0.0)
    flat = y.reshape(y.shape[0], -1)                    # NCHW flatten: c*4 + i*2 + j
    h = jnp.maximum(flat @ fc1_w.T + fc1_b, 0.0)
    return h @ fc2_w.T + fc2_b


if __name__ == "__main__":
    key = jax.random.PRNGKey(0)
    ks = jax.random.split(key, 9)

    B = 2
    x = jax.random.normal(ks[0], (B, 1, 4, 4), dtype=jnp.float32)

    # Deterministic synthetic parameters (PyTorch shapes).
    conv1_w = 0.1 * jax.random.normal(ks[1], (32, 1, 2, 2), dtype=jnp.float32)
    conv1_b = 0.1 * jax.random.normal(ks[2], (32,), dtype=jnp.float32)
    conv2_w = 0.1 * jax.random.normal(ks[3], (64, 32, 2, 2), dtype=jnp.float32)
    conv2_b = 0.1 * jax.random.normal(ks[4], (64,), dtype=jnp.float32)
    fc1_w = 0.1 * jax.random.normal(ks[5], (128, 256), dtype=jnp.float32)
    fc1_b = 0.1 * jax.random.normal(ks[6], (128,), dtype=jnp.float32)
    fc2_w = 0.1 * jax.random.normal(ks[7], (4, 128), dtype=jnp.float32)
    fc2_b = 0.1 * jax.random.normal(ks[8], (4,), dtype=jnp.float32)

    kernel_params = prep_params(conv1_w, conv1_b, conv2_w, conv2_b,
                                fc1_w, fc1_b, fc2_w, fc2_b)

    out = jax.block_until_ready(policy_cnn_forward(x, kernel_params))

    ref = jax.block_until_ready(
        reference_forward(x, conv1_w, conv1_b, conv2_w, conv2_b,
                          fc1_w, fc1_b, fc2_w, fc2_b))

    assert out.shape == (B, 4)
    assert jnp.allclose(out, ref, atol=1e-4, rtol=1e-4), (out, ref)
    print("KERNEL_OK")
</pallas_src>

<mosaic_0001>
module attributes {stable_mosaic.version = 11 : i64} {
  func.func @policy_cnn_kernel(%arg0: i32, %arg1: memref<8x16xf32, #tpu.memory_space<vmem>>, %arg2: memref<16x384xf32, #tpu.memory_space<vmem>>, %arg3: memref<1x384xf32, #tpu.memory_space<vmem>>, %arg4: memref<384x256xf32, #tpu.memory_space<vmem>>, %arg5: memref<1x256xf32, #tpu.memory_space<vmem>>, %arg6: memref<256x128xf32, #tpu.memory_space<vmem>>, %arg7: memref<1x128xf32, #tpu.memory_space<vmem>>, %arg8: memref<128x128xf32, #tpu.memory_space<vmem>>, %arg9: memref<1x128xf32, #tpu.memory_space<vmem>>, %arg10: memref<8x128xf32, #tpu.memory_space<vmem>>) attributes {dimension_semantics = [#tpu.dimension_semantics<parallel>], iteration_bounds = array<i64: 1>, scalar_prefetch = 0 : i64, scratch_operands = 0 : i64, tpu.core_type = #tpu.core_type<tc>, window_params = [{transform_indices = @transform_0, window_bounds = array<i64: 8, 16>}, {pipeline_mode = #tpu.pipeline_mode<synchronous>, transform_indices = @transform_1, window_bounds = array<i64: 16, 384>}, {pipeline_mode = #tpu.pipeline_mode<synchronous>, transform_indices = @transform_2, window_bounds = array<i64: 1, 384>}, {pipeline_mode = #tpu.pipeline_mode<synchronous>, transform_indices = @transform_3, window_bounds = array<i64: 384, 256>}, {pipeline_mode = #tpu.pipeline_mode<synchronous>, transform_indices = @transform_4, window_bounds = array<i64: 1, 256>}, {pipeline_mode = #tpu.pipeline_mode<synchronous>, transform_indices = @transform_5, window_bounds = array<i64: 256, 128>}, {pipeline_mode = #tpu.pipeline_mode<synchronous>, transform_indices = @transform_6, window_bounds = array<i64: 1, 128>}, {pipeline_mode = #tpu.pipeline_mode<synchronous>, transform_indices = @transform_7, window_bounds = array<i64: 128, 128>}, {pipeline_mode = #tpu.pipeline_mode<synchronous>, transform_indices = @transform_8, window_bounds = array<i64: 1, 128>}, {transform_indices = @transform_9, window_bounds = array<i64: 8, 128>}]} {
    %c0 = arith.constant 0 : index
    %c0_0 = arith.constant 0 : index
    %0 = vector.load %arg1[%c0, %c0_0] : memref<8x16xf32, #tpu.memory_space<vmem>>, vector<8x16xf32>
    %c0_1 = arith.constant 0 : index
    %c0_2 = arith.constant 0 : index
    %1 = vector.load %arg2[%c0_1, %c0_2] : memref<16x384xf32, #tpu.memory_space<vmem>>, vector<16x384xf32>
    %cst = arith.constant dense<0.000000e+00> : vector<8x384xf32>
    %2 = tpu.matmul %0, %1, %cst {dimension_numbers = #tpu.dot_dimension_numbers<[1], [0], [0], [1], [0, 0, 1, 1], [], []>} : vector<8x16xf32>, vector<16x384xf32>, vector<8x384xf32> -> vector<8x384xf32>
    %c0_3 = arith.constant 0 : index
    %c0_4 = arith.constant 0 : index
    %3 = vector.load %arg3[%c0_3, %c0_4] : memref<1x384xf32, #tpu.memory_space<vmem>>, vector<1x384xf32>
    %4 = vector.broadcast %3 : vector<1x384xf32> to vector<8x384xf32>
    %5 = arith.addf %2, %4 : vector<8x384xf32>
    %cst_5 = arith.constant 0.000000e+00 : f32
    %6 = vector.broadcast %cst_5 : f32 to vector<8x384xf32>
    %7 = arith.maximumf %5, %6 : vector<8x384xf32>
    %c0_6 = arith.constant 0 : index
    %c0_7 = arith.constant 0 : index
    %8 = vector.load %arg4[%c0_6, %c0_7] : memref<384x256xf32, #tpu.memory_space<vmem>>, vector<384x256xf32>
    %cst_8 = arith.constant dense<0.000000e+00> : vector<8x256xf32>
    %9 = tpu.matmul %7, %8, %cst_8 {dimension_numbers = #tpu.dot_dimension_numbers<[1], [0], [0], [1], [0, 0, 1, 1], [], []>} : vector<8x384xf32>, vector<384x256xf32>, vector<8x256xf32> -> vector<8x256xf32>
    %c0_9 = arith.constant 0 : index
    %c0_10 = arith.constant 0 : index
    %10 = vector.load %arg5[%c0_9, %c0_10] : memref<1x256xf32, #tpu.memory_space<vmem>>, vector<1x256xf32>
    %11 = vector.broadcast %10 : vector<1x256xf32> to vector<8x256xf32>
    %12 = arith.addf %9, %11 : vector<8x256xf32>
    %cst_11 = arith.constant 0.000000e+00 : f32
    %13 = vector.broadcast %cst_11 : f32 to vector<8x256xf32>
    %14 = arith.maximumf %12, %13 : vector<8x256xf32>
    %c0_12 = arith.constant 0 : index
    %c0_13 = arith.constant 0 : index
    %15 = vector.load %arg6[%c0_12, %c0_13] : memref<256x128xf32, #tpu.memory_space<vmem>>, vector<256x128xf32>
    %cst_14 = arith.constant dense<0.000000e+00> : vector<8x128xf32>
    %16 = tpu.matmul %14, %15, %cst_14 {dimension_numbers = #tpu.dot_dimension_numbers<[1], [0], [0], [1], [0, 0, 1, 1], [], []>} : vector<8x256xf32>, vector<256x128xf32>, vector<8x128xf32> -> vector<8x128xf32>
    %c0_15 = arith.constant 0 : index
    %c0_16 = arith.constant 0 : index
    %17 = vector.load %arg7[%c0_15, %c0_16] : memref<1x128xf32, #tpu.memory_space<vmem>>, vector<1x128xf32>
    %18 = vector.broadcast %17 : vector<1x128xf32> to vector<8x128xf32>
    %19 = arith.addf %16, %18 : vector<8x128xf32>
    %cst_17 = arith.constant 0.000000e+00 : f32
    %20 = vector.broadcast %cst_17 : f32 to vector<8x128xf32>
    %21 = arith.maximumf %19, %20 : vector<8x128xf32>
    %c0_18 = arith.constant 0 : index
    %c0_19 = arith.constant 0 : index
    %22 = vector.load %arg8[%c0_18, %c0_19] : memref<128x128xf32, #tpu.memory_space<vmem>>, vector<128x128xf32>
    %cst_20 = arith.constant dense<0.000000e+00> : vector<8x128xf32>
    %23 = tpu.matmul %21, %22, %cst_20 {dimension_numbers = #tpu.dot_dimension_numbers<[1], [0], [0], [1], [0, 0, 1, 1], [], []>} : vector<8x128xf32>, vector<128x128xf32>, vector<8x128xf32> -> vector<8x128xf32>
    %c0_21 = arith.constant 0 : index
    %c0_22 = arith.constant 0 : index
    %24 = vector.load %arg9[%c0_21, %c0_22] : memref<1x128xf32, #tpu.memory_space<vmem>>, vector<1x128xf32>
    %25 = vector.broadcast %24 : vector<1x128xf32> to vector<8x128xf32>
    %26 = arith.addf %23, %25 : vector<8x128xf32>
    %c0_23 = arith.constant 0 : index
    %c0_24 = arith.constant 0 : index
    %27 = vector.load %arg10[%c0_23, %c0_24] : memref<8x128xf32, #tpu.memory_space<vmem>>, vector<8x128xf32>
    tpu.vector_store %arg10[%c0_23, %c0_24], %26 {strides = array<i32>} : memref<8x128xf32, #tpu.memory_space<vmem>>, vector<8x128xf32>,
    return
  }
  func.func @transform_0(%arg0: i32) -> (i32, i32) {
    %c0_i32 = arith.constant 0 : i32
    %c0_i32_0 = arith.constant 0 : i32
    return %arg0, %c0_i32 : i32, i32
  }
  func.func @transform_1(%arg0: i32) -> (i32, i32) {
    %c0_i32 = arith.constant 0 : i32
    %c0_i32_0 = arith.constant 0 : i32
    %c0_i32_1 = arith.constant 0 : i32
    return %c0_i32, %c0_i32_0 : i32, i32
  }
  func.func @transform_2(%arg0: i32) -> (i32, i32) {
    %c0_i32 = arith.constant 0 : i32
    %c0_i32_0 = arith.constant 0 : i32
    %c0_i32_1 = arith.constant 0 : i32
    return %c0_i32, %c0_i32_0 : i32, i32
  }
  func.func @transform_3(%arg0: i32) -> (i32, i32) {
    %c0_i32 = arith.constant 0 : i32
    %c0_i32_0 = arith.constant 0 : i32
    %c0_i32_1 = arith.constant 0 : i32
    return %c0_i32, %c0_i32_0 : i32, i32
  }
  func.func @transform_4(%arg0: i32) -> (i32, i32) {
    %c0_i32 = arith.constant 0 : i32
    %c0_i32_0 = arith.constant 0 : i32
    %c0_i32_1 = arith.constant 0 : i32
    return %c0_i32, %c0_i32_0 : i32, i32
  }
  func.func @transform_5(%arg0: i32) -> (i32, i32) {
    %c0_i32 = arith.constant 0 : i32
    %c0_i32_0 = arith.constant 0 : i32
    %c0_i32_1 = arith.constant 0 : i32
    return %c0_i32, %c0_i32_0 : i32, i32
  }
  func.func @transform_6(%arg0: i32) -> (i32, i32) {
    %c0_i32 = arith.constant 0 : i32
    %c0_i32_0 = arith.constant 0 : i32
    %c0_i32_1 = arith.constant 0 : i32
    return %c0_i32, %c0_i32_0 : i32, i32
  }
  func.func @transform_7(%arg0: i32) -> (i32, i32) {
    %c0_i32 = arith.constant 0 : i32
    %c0_i32_0 = arith.constant 0 : i32
    %c0_i32_1 = arith.constant 0 : i32
    return %c0_i32, %c0_i32_0 : i32, i32
  }
  func.func @transform_8(%arg0: i32) -> (i32, i32) {
    %c0_i32 = arith.constant 0 : i32
    %c0_i32_0 = arith.constant 0 : i32
    %c0_i32_1 = arith.constant 0 : i32
    return %c0_i32, %c0_i32_0 : i32, i32
  }
  func.func @transform_9(%arg0: i32) -> (i32, i32) {
    %c0_i32 = arith.constant 0 : i32
    %c0_i32_0 = arith.constant 0 : i32
    return %arg0, %c0_i32 : i32, i32
  }
}

</mosaic_0001>

<llo_original>
// kernel: tpu_custom_call.1
$region0: #{tpu_custom_call.1}
  #allocation0 [shape = 'u32[]', space=smem, size = 0x4, offset = 0x4, fixed_abs, tag = 'smem constant byte address 0x4 - core index']
  #allocation1 [shape = 'u32[72,128]{1,0:T(1,128)}', space=vmem, size = 0x9000, scoped, tag = 'internal scratch']
  %s0 = inlined_call_operand.hbm [shape: f32[2,16], index: 0, kind: input, shape index: {}]
  %s1 = inlined_call_operand.hbm [shape: f32[16,384], index: 1, kind: input, shape index: {}]
  %s2 = inlined_call_operand.hbm [shape: f32[1,384], index: 2, kind: input, shape index: {}]
  %s3 = inlined_call_operand.hbm [shape: f32[384,256], index: 3, kind: input, shape index: {}]
  %s4 = inlined_call_operand.vmem [shape: f32[1,256], index: 4, kind: input, shape index: {}]
  %s5 = inlined_call_operand.hbm [shape: f32[256,128], index: 5, kind: input, shape index: {}]
  %s6 = inlined_call_operand.vmem [shape: f32[1,128], index: 6, kind: input, shape index: {}]
  %s7 = inlined_call_operand.hbm [shape: f32[128,128], index: 7, kind: input, shape index: {}]
  %s8 = inlined_call_operand.vmem [shape: f32[1,128], index: 8, kind: input, shape index: {}]
  %s9 = inlined_call_operand.hbm [shape: f32[2,128], index: 9, kind: output, shape index: {}]
  %s10 = sld [smem:[#allocation0]]
  $region70: #{tpu_custom_call.1} parent=0
    _
  %s12 = ssub.s32 1, %s10
  %s13 = scalar_select 0, %s12, %s10
  $region1: #{tpu_custom_call.1} parent=0
    #allocation2 [shape = 'u8[4096]{0}', space=vmem, size = 0x1000, scoped, tag = 'input window, operand 0, single buffered']
    #allocation3 [shape = 's32[1]{0}', space=sflag, size = 0x4, scoped, tag = 'scoped memory for tpu_custom_call.1']
    #allocation4 [shape = 's32[1]{0}', space=sflag, size = 0x4, scoped, tag = 'scoped memory for tpu_custom_call.1']
    #allocation5 [shape = 'u8[24576]{0}', space=vmem, size = 0x6000, scoped, tag = 'input window, operand 1, single buffered']
    #allocation6 [shape = 's32[1]{0}', space=sflag, size = 0x4, scoped, tag = 'scoped memory for tpu_custom_call.1']
    #allocation7 [shape = 'u8[1536]{0}', space=vmem, size = 0x800, scoped, tag = 'input window, operand 2, single buffered']
    #allocation8 [shape = 'u8[393216]{0}', space=vmem, size = 0x60000, scoped, tag = 'input window, operand 3, single buffered']
    #allocation9 [shape = 's32[1]{0}', space=sflag, size = 0x4, scoped, tag = 'scoped memory for tpu_custom_call.1']
    #allocation10 [shape = 'u8[131072]{0}', space=vmem, size = 0x20000, scoped, tag = 'input window, operand 5, single buffered']
    #allocation11 [shape = 'u8[65536]{0}', space=vmem, size = 0x10000, scoped, tag = 'input window, operand 7, single buffered']
    #allocation12 [shape = 's32[1]{0}', space=sflag, size = 0x4, scoped, tag = 'scoped memory for tpu_custom_call.1']
    #allocation13 [shape = 'u8[4096]{0}', space=vmem, size = 0x1000, scoped, tag = 'output window, operand 0, single buffered']
    %14 = vsyncpa [#allocation3], 0
    %15 = vsyncpa [#allocation6], 0
    %16 = vsyncpa [#allocation9], 0
    %17 = vsyncpa [#allocation12], 0
    %18 = vsyncpa [#allocation4], 0
    // Predicated region
    $region2: #{tpu_custom_call.1} parent=1 // pred_check
      _
    $region3: #{tpu_custom_call.1} parent=1 // pred_check_branch
      %20 = sbr.rel (0) target = $region5
    $region4: #{tpu_custom_call.1} parent=1 // pred_region
      %22 = vsyncadd [#allocation3], 96
      %s23 = sshll.u32 %s0, 4
      %s24 = int_to_ptr.hbm [resolvable:$true] %s23
      %s25 = sshll.u32 [#allocation2], 4
      %s26 = int_to_ptr.vmem [resolvable:$true] %s25
      %31 = dma.hbm_to_vmem [thread:$0]  %s24, 32, %s26, [#allocation3], 32, 32, 2
    $region5: #{tpu_custom_call.1} parent=1 // pred_fallthru
      _
    // Predicated region
    $region6: #{tpu_custom_call.1} parent=1 // pred_check
      _
    $region7: #{tpu_custom_call.1} parent=1 // pred_check_branch
      %33 = sbr.rel (0) target = $region9
    $region8: #{tpu_custom_call.1} parent=1 // pred_region
      %35 = vsyncadd [#allocation6], 0
      %s36 = sshll.u32 %s1, 4
      %s37 = int_to_ptr.hbm [resolvable:$true] %s36
      %s38 = sshll.u32 [#allocation5], 4
      %s39 = int_to_ptr.vmem [resolvable:$true] %s38
      %44 = dma.hbm_to_vmem [thread:$0]  %s37, 768, %s39, [#allocation6], 384, 384, 24
    $region9: #{tpu_custom_call.1} parent=1 // pred_fallthru
      _
    // Predicated region
    $region10: #{tpu_custom_call.1} parent=1 // pred_check
      _
    $region11: #{tpu_custom_call.1} parent=1 // pred_check_branch
      %46 = sbr.rel (0) target = $region13
    $region12: #{tpu_custom_call.1} parent=1 // pred_region
      %48 = vsyncadd [#allocation6], 0
      %s50 = sshll.u32 %s2, 4
      %s51 = int_to_ptr.hbm [resolvable:$true] %s50
      %s52 = sshll.u32 [#allocation7], 4
      %s53 = int_to_ptr.vmem [resolvable:$true] %s52
      %55 = dma.hbm_to_vmem [thread:$0]  %s51, 48, %s53, [#allocation6]
    $region13: #{tpu_custom_call.1} parent=1 // pred_fallthru
      _
    // Predicated region
    $region14: #{tpu_custom_call.1} parent=1 // pred_check
      _
    $region15: #{tpu_custom_call.1} parent=1 // pred_check_branch
      %57 = sbr.rel (0) target = $region17
    $region16: #{tpu_custom_call.1} parent=1 // pred_region
      %59 = vsyncadd [#allocation9], 0
      %s60 = sshll.u32 %s3, 4
      %s61 = int_to_ptr.hbm [resolvable:$true] %s60
      %s62 = sshll.u32 [#allocation8], 4
      %s63 = int_to_ptr.vmem [resolvable:$true] %s62
      %68 = dma.hbm_to_vmem [thread:$0]  %s61, 12288, %s63, [#allocation9], 256, 256, 16
    $region17: #{tpu_custom_call.1} parent=1 // pred_fallthru
      _
    // Predicated region
    $region18: #{tpu_custom_call.1} parent=1 // pred_check
      _
    $region19: #{tpu_custom_call.1} parent=1 // pred_check_branch
      %70 = sbr.rel (0) target = $region21
    $region20: #{tpu_custom_call.1} parent=1 // pred_region
      _
    $region21: #{tpu_custom_call.1} parent=1 // pred_fallthru
      _
    // Predicated region
    $region22: #{tpu_custom_call.1} parent=1 // pred_check
      _
    $region23: #{tpu_custom_call.1} parent=1 // pred_check_branch
      %72 = sbr.rel (0) target = $region25
    $region24: #{tpu_custom_call.1} parent=1 // pred_region
      %74 = vsyncadd [#allocation9], 0
      %s75 = sshll.u32 %s5, 4
      %s76 = int_to_ptr.hbm [resolvable:$true] %s75
      %s77 = sshll.u32 [#allocation10], 4
      %s78 = int_to_ptr.vmem [resolvable:$true] %s77
      %83 = dma.hbm_to_vmem [thread:$0]  %s76, 4096, %s78, [#allocation9], 128, 128, 8
    $region25: #{tpu_custom_call.1} parent=1 // pred_fallthru
      _
    // Predicated region
    $region26: #{tpu_custom_call.1} parent=1 // pred_check
      _
    $region27: #{tpu_custom_call.1} parent=1 // pred_check_branch
      %85 = sbr.rel (0) target = $region29
    $region28: #{tpu_custom_call.1} parent=1 // pred_region
      _
    $region29: #{tpu_custom_call.1} parent=1 // pred_fallthru
      _
    // Predicated region
    $region30: #{tpu_custom_call.1} parent=1 // pred_check
      _
    $region31: #{tpu_custom_call.1} parent=1 // pred_check_branch
      %87 = sbr.rel (0) target = $region33
    $region32: #{tpu_custom_call.1} parent=1 // pred_region
      %89 = vsyncadd [#allocation12], 0
      %s90 = sshll.u32 %s7, 4
      %s91 = int_to_ptr.hbm [resolvable:$true] %s90
      %s92 = sshll.u32 [#allocation11], 4
      %s93 = int_to_ptr.vmem [resolvable:$true] %s92
      %98 = dma.hbm_to_vmem [thread:$0]  %s91, 2048, %s93, [#allocation12], 128, 128, 8
    $region33: #{tpu_custom_call.1} parent=1 // pred_fallthru
      _
    // Predicated region
    $region34: #{tpu_custom_call.1} parent=1 // pred_check
      _
    $region35: #{tpu_custom_call.1} parent=1 // pred_check_branch
      %100 = sbr.rel (0) target = $region37
    $region36: #{tpu_custom_call.1} parent=1 // pred_region
      _
    $region37: #{tpu_custom_call.1} parent=1 // pred_fallthru
      _
    // Predicated region
    $region38: #{tpu_custom_call.1} parent=1 // pred_check
      _
    $region39: #{tpu_custom_call.1} parent=1 // pred_check_branch
      %102 = sbr.rel (0) target = $region41
    $region40: #{tpu_custom_call.1} parent=1 // pred_region
      %104 = dma.done [#allocation3], 128
    $region41: #{tpu_custom_call.1} parent=1 // pred_fallthru
      _
    // Predicated region
    $region42: #{tpu_custom_call.1} parent=1 // pred_check
      _
    $region43: #{tpu_custom_call.1} parent=1 // pred_check_branch
      %106 = sbr.rel (0) target = $region45
    $region44: #{tpu_custom_call.1} parent=1 // pred_region
      %108 = dma.done [#allocation6], 768
    $region45: #{tpu_custom_call.1} parent=1 // pred_fallthru
      _
    // Predicated region
    $region46: #{tpu_custom_call.1} parent=1 // pred_check
      _
    $region47: #{tpu_custom_call.1} parent=1 // pred_check_branch
      %110 = sbr.rel (0) target = $region49
    $region48: #{tpu_custom_call.1} parent=1 // pred_region
      %112 = dma.done [#allocation6], 48
    $region49: #{tpu_custom_call.1} parent=1 // pred_fallthru
      _
    // Predicated region
    $region50: #{tpu_custom_call.1} parent=1 // pred_check
      _
    $region51: #{tpu_custom_call.1} parent=1 // pred_check_branch
      %114 = sbr.rel (0) target = $region53
    $region52: #{tpu_custom_call.1} parent=1 // pred_region
      %116 = dma.done [#allocation9], 12288
    $region53: #{tpu_custom_call.1} parent=1 // pred_fallthru
      _
    // Predicated region
    $region54: #{tpu_custom_call.1} parent=1 // pred_check
      _
    $region55: #{tpu_custom_call.1} parent=1 // pred_check_branch
      %118 = sbr.rel (0) target = $region57
    $region56: #{tpu_custom_call.1} parent=1 // pred_region
      %120 = dma.done [#allocation9], 4096
    $region57: #{tpu_custom_call.1} parent=1 // pred_fallthru
      _
    // Predicated region
    $region58: #{tpu_custom_call.1} parent=1 // pred_check
      _
    $region59: #{tpu_custom_call.1} parent=1 // pred_check_branch
      %122 = sbr.rel (0) target = $region61
    $region60: #{tpu_custom_call.1} parent=1 // pred_region
      %124 = dma.done [#allocation12], 2048
    $region61: #{tpu_custom_call.1} parent=1 // pred_fallthru
      _
    %v125 = vld [vmem:[#allocation2] sm:$0xff]
    %v126 = vld [vmem:[#allocation5] sm:$0xff]
    %v127 = vld [vmem:[#allocation5 + $0x8] sm:$0xff]
    %v128 = vld [vmem:[#allocation5 + $0x10] sm:$0xff]
    %v129 = vld [vmem:[#allocation5 + $0x18] sm:$0xff]
    %v130 = vld [vmem:[#allocation5 + $0x20] sm:$0xff]
    %v131 = vld [vmem:[#allocation5 + $0x28] sm:$0xff]
    %v132 = vld [vmem:[#allocation7] sm:$0x7]
    %v134 = vperm.slane %v132, 0
    %v135 = vperm.slane %v132, 1
    %v136 = vperm.slane %v132, 2
    %vm140 = vcmask 130048
    %v142 = vsel %vm140, %v125, 0
    %144 = vmatpush.msra.mxu0 0.0
    %145 = vmatpush.msra.mxu0 0.0
    %146 = vmatpush.msra.mxu0 0.0
    %147 = vmatpush.msra.mxu0 0.0
    %148 = vmatpush.msra.mxu0 0.0
    %149 = vmatpush.msra.mxu0 0.0
    %150 = vmatpush.msra.mxu0 0.0
    %151 = vmatpush.msra.mxu0 0.0
    %152 = vmatpush.msra.mxu0 0.0
    %153 = vmatpush.msra.mxu0 0.0
    %154 = vmatpush.msra.mxu0 0.0
    %155 = vmatpush.msra.mxu0 0.0
    %156 = vmatpush.msra.mxu0 0.0
    %157 = vmatpush.msra.mxu0 0.0
    %158 = vmatpush.msra.mxu0 %v129
    %159 = vmatpush.msra.mxu0 %v126
    %160 = vmatmul.f32.gmra.mxu0 %v142
    %v161 = vpop.f32.mrf.mxu0
    %v162 = vadd.f32 %v134, %v161
    %163 = vdwg.mxu0
    %164 = vmatpush.msra.mxu0 0.0
    %165 = vmatpush.msra.mxu0 0.0
    %166 = vmatpush.msra.mxu0 0.0
    %167 = vmatpush.msra.mxu0 0.0
    %168 = vmatpush.msra.mxu0 0.0
    %169 = vmatpush.msra.mxu0 0.0
    %170 = vmatpush.msra.mxu0 0.0
    %171 = vmatpush.msra.mxu0 0.0
    %172 = vmatpush.msra.mxu0 0.0
    %173 = vmatpush.msra.mxu0 0.0
    %174 = vmatpush.msra.mxu0 0.0
    %175 = vmatpush.msra.mxu0 0.0
    %176 = vmatpush.msra.mxu0 0.0
    %177 = vmatpush.msra.mxu0 0.0
    %178 = vmatpush.msra.mxu0 %v130
    %179 = vmatpush.msra.mxu0 %v127
    %180 = vmatmul.f32.gmra.mxu0 %v142
    %v181 = vpop.f32.mrf.mxu0
    %v182 = vadd.f32 %v135, %v181
    %183 = vdwg.mxu0
    %184 = vmatpush.msra.mxu0 0.0
    %185 = vmatpush.msra.mxu0 0.0
    %186 = vmatpush.msra.mxu0 0.0
    %187 = vmatpush.msra.mxu0 0.0
    %188 = vmatpush.msra.mxu0 0.0
    %189 = vmatpush.msra.mxu0 0.0
    %190 = vmatpush.msra.mxu0 0.0
    %191 = vmatpush.msra.mxu0 0.0
    %192 = vmatpush.msra.mxu0 0.0
    %193 = vmatpush.msra.mxu0 0.0
    %194 = vmatpush.msra.mxu0 0.0
    %195 = vmatpush.msra.mxu0 0.0
    %196 = vmatpush.msra.mxu0 0.0
    %197 = vmatpush.msra.mxu0 0.0
    %198 = vmatpush.msra.mxu0 %v131
    %199 = vmatpush.msra.mxu0 %v128
    %200 = vmatmul.f32.gmra.mxu0 %v142
    %v201 = vpop.f32.mrf.mxu0
    %v202 = vadd.f32 %v136, %v201
    %203 = vdwg.mxu0
    %v204 = vmax.f32 %v162, 0.0
    %v205 = vmax.f32 %v182, 0.0
    %v206 = vmax.f32 %v202, 0.0
    %v207 = vld [vmem:[#allocation8] sm:$0xff]
    %v208 = vld [vmem:[#allocation8 + $0x8] sm:$0xff]
    %v209 = vld [vmem:[#allocation8 + $0x10] sm:$0xff]
    %v210 = vld [vmem:[#allocation8 + $0x18] sm:$0xff]
    %v211 = vld [vmem:[#allocation8 + $0x20] sm:$0xff]
    %v212 = vld [vmem:[#allocation8 + $0x28] sm:$0xff]
    %v213 = vld [vmem:[#allocation8 + $0x30] sm:$0xff]
    %v214 = vld [vmem:[#allocation8 + $0x38] sm:$0xff]
    %v215 = vld [vmem:[#allocation8 + $0x40] sm:$0xff]
    %v216 = vld [vmem:[#allocation8 + $0x48] sm:$0xff]
    %v217 = vld [vmem:[#allocation8 + $0x50] sm:$0xff]
    %v218 = vld [vmem:[#allocation8 + $0x58] sm:$0xff]
    %v219 = vld [vmem:[#allocation8 + $0x60] sm:$0xff]
    %v220 = vld [vmem:[#allocation8 + $0x68] sm:$0xff]
    %v221 = vld [vmem:[#allocation8 + $0x70] sm:$0xff]
    %v222 = vld [vmem:[#allocation8 + $0x78] sm:$0xff]
    %v223 = vld [vmem:[#allocation8 + $0x80] sm:$0xff]
    %v224 = vld [vmem:[#allocation8 + $0x88] sm:$0xff]
    %v225 = vld [vmem:[#allocation8 + $0x90] sm:$0xff]
    %v226 = vld [vmem:[#allocation8 + $0x98] sm:$0xff]
    %v227 = vld [vmem:[#allocation8 + $0xa0] sm:$0xff]
    %v228 = vld [vmem:[#allocation8 + $0xa8] sm:$0xff]
    %v229 = vld [vmem:[#allocation8 + $0xb0] sm:$0xff]
    %v230 = vld [vmem:[#allocation8 + $0xb8] sm:$0xff]
    %v231 = vld [vmem:[#allocation8 + $0xc0] sm:$0xff]
    %v232 = vld [vmem:[#allocation8 + $0xc8] sm:$0xff]
    %v233 = vld [vmem:[#allocation8 + $0xd0] sm:$0xff]
    %v234 = vld [vmem:[#allocation8 + $0xd8] sm:$0xff]
    %v235 = vld [vmem:[#allocation8 + $0xe0] sm:$0xff]
    %v236 = vld [vmem:[#allocation8 + $0xe8] sm:$0xff]
    %v237 = vld [vmem:[#allocation8 + $0xf0] sm:$0xff]
    %v238 = vld [vmem:[#allocation8 + $0xf8] sm:$0xff]
    %v239 = vld [vmem:[#allocation8 + $0x100] sm:$0xff]
    %v240 = vld [vmem:[#allocation8 + $0x108] sm:$0xff]
    %v241 = vld [vmem:[#allocation8 + $0x110] sm:$0xff]
    %v242 = vld [vmem:[#allocation8 + $0x118] sm:$0xff]
    %v243 = vld [vmem:[#allocation8 + $0x120] sm:$0xff]
    %v244 = vld [vmem:[#allocation8 + $0x128] sm:$0xff]
    %v245 = vld [vmem:[#allocation8 + $0x130] sm:$0xff]
    %v246 = vld [vmem:[#allocation8 + $0x138] sm:$0xff]
    %v247 = vld [vmem:[#allocation8 + $0x140] sm:$0xff]
    %v248 = vld [vmem:[#allocation8 + $0x148] sm:$0xff]
    %v249 = vld [vmem:[#allocation8 + $0x150] sm:$0xff]
    %v250 = vld [vmem:[#allocation8 + $0x158] sm:$0xff]
    %v251 = vld [vmem:[#allocation8 + $0x160] sm:$0xff]
    %v252 = vld [vmem:[#allocation8 + $0x168] sm:$0xff]
    %v253 = vld [vmem:[#allocation8 + $0x170] sm:$0xff]
    %v254 = vld [vmem:[#allocation8 + $0x178] sm:$0xff]
    %v255 = vld [vmem:[#allocation8 + $0x180] sm:$0xff]
    %v256 = vld [vmem:[#allocation8 + $0x188] sm:$0xff]
    %v257 = vld [vmem:[#allocation8 + $0x190] sm:$0xff]
    %v258 = vld [vmem:[#allocation8 + $0x198] sm:$0xff]
    %v259 = vld [vmem:[#allocation8 + $0x1a0] sm:$0xff]
    %v260 = vld [vmem:[#allocation8 + $0x1a8] sm:$0xff]
    %v261 = vld [vmem:[#allocation8 + $0x1b0] sm:$0xff]
    %v262 = vld [vmem:[#allocation8 + $0x1b8] sm:$0xff]
    %v263 = vld [vmem:[#allocation8 + $0x1c0] sm:$0xff]
    %v264 = vld [vmem:[#allocation8 + $0x1c8] sm:$0xff]
    %v265 = vld [vmem:[#allocation8 + $0x1d0] sm:$0xff]
    %v266 = vld [vmem:[#allocation8 + $0x1d8] sm:$0xff]
    %v267 = vld [vmem:[#allocation8 + $0x1e0] sm:$0xff]
    %v268 = vld [vmem:[#allocation8 + $0x1e8] sm:$0xff]
    %v269 = vld [vmem:[#allocation8 + $0x1f0] sm:$0xff]
    %v270 = vld [vmem:[#allocation8 + $0x1f8] sm:$0xff]
    %v271 = vld [vmem:[#allocation8 + $0x200] sm:$0xff]
    %v272 = vld [vmem:[#allocation8 + $0x208] sm:$0xff]
    %v273 = vld [vmem:[#allocation8 + $0x210] sm:$0xff]
    %v274 = vld [vmem:[#allocation8 + $0x218] sm:$0xff]
    %v275 = vld [vmem:[#allocation8 + $0x220] sm:$0xff]
    %v276 = vld [vmem:[#allocation8 + $0x228] sm:$0xff]
    %v277 = vld [vmem:[#allocation8 + $0x230] sm:$0xff]
    %v278 = vld [vmem:[#allocation8 + $0x238] sm:$0xff]
    %v279 = vld [vmem:[#allocation8 + $0x240] sm:$0xff]
    %v280 = vld [vmem:[#allocation8 + $0x248] sm:$0xff]
    %v281 = vld [vmem:[#allocation8 + $0x250] sm:$0xff]
    %v282 = vld [vmem:[#allocation8 + $0x258] sm:$0xff]
    %v283 = vld [vmem:[#allocation8 + $0x260] sm:$0xff]
    %v284 = vld [vmem:[#allocation8 + $0x268] sm:$0xff]
    %v285 = vld [vmem:[#allocation8 + $0x270] sm:$0xff]
    %v286 = vld [vmem:[#allocation8 + $0x278] sm:$0xff]
    %v287 = vld [vmem:[#allocation8 + $0x280] sm:$0xff]
    %v288 = vld [vmem:[#allocation8 + $0x288] sm:$0xff]
    %v289 = vld [vmem:[#allocation8 + $0x290] sm:$0xff]
    %v290 = vld [vmem:[#allocation8 + $0x298] sm:$0xff]
    %v291 = vld [vmem:[#allocation8 + $0x2a0] sm:$0xff]
    %v292 = vld [vmem:[#allocation8 + $0x2a8] sm:$0xff]
    %v293 = vld [vmem:[#allocation8 + $0x2b0] sm:$0xff]
    %v294 = vld [vmem:[#allocation8 + $0x2b8] sm:$0xff]
    %v295 = vld [vmem:[#allocation8 + $0x2c0] sm:$0xff]
    %v296 = vld [vmem:[#allocation8 + $0x2c8] sm:$0xff]
    %v297 = vld [vmem:[#allocation8 + $0x2d0] sm:$0xff]
    %v298 = vld [vmem:[#allocation8 + $0x2d8] sm:$0xff]
    %v299 = vld [vmem:[#allocation8 + $0x2e0] sm:$0xff]
    %v300 = vld [vmem:[#allocation8 + $0x2e8] sm:$0xff]
    %v301 = vld [vmem:[#allocation8 + $0x2f0] sm:$0xff]
    %v302 = vld [vmem:[#allocation8 + $0x2f8] sm:$0xff]
    %v303 = vld [vmem:[%s4] sm:$0x3]
    %v305 = vperm.slane %v303, 0
    %v306 = vperm.slane %v303, 1
    %309 = vmatpush.msra.mxu0 %v237
    %310 = vmatpush.msra.mxu0 %v235
    %311 = vmatpush.msra.mxu0 %v233
    %312 = vmatpush.msra.mxu0 %v231
    %313 = vmatpush.msra.mxu0 %v229
    %314 = vmatpush.msra.mxu0 %v227
    %315 = vmatpush.msra.mxu0 %v225
    %316 = vmatpush.msra.mxu0 %v223
    %317 = vmatpush.msra.mxu0 %v221
    %318 = vmatpush.msra.mxu0 %v219
    %319 = vmatpush.msra.mxu0 %v217
    %320 = vmatpush.msra.mxu0 %v215
    %321 = vmatpush.msra.mxu0 %v213
    %322 = vmatpush.msra.mxu0 %v211
    %323 = vmatpush.msra.mxu0 %v209
    %324 = vmatpush.msra.mxu0 %v207
    %325 = vmatmul.f32.gmra.mxu0 %v204
    %v326 = vpop.f32.mrf.mxu0
    %v327 = vadd.f32 %v305, %v326
    %328 = vdwg.mxu0
    %329 = vmatpush.msra.mxu0 %v269
    %330 = vmatpush.msra.mxu0 %v267
    %331 = vmatpush.msra.mxu0 %v265
    %332 = vmatpush.msra.mxu0 %v263
    %333 = vmatpush.msra.mxu0 %v261
    %334 = vmatpush.msra.mxu0 %v259
    %335 = vmatpush.msra.mxu0 %v257
    %336 = vmatpush.msra.mxu0 %v255
    %337 = vmatpush.msra.mxu0 %v253
    %338 = vmatpush.msra.mxu0 %v251
    %339 = vmatpush.msra.mxu0 %v249
    %340 = vmatpush.msra.mxu0 %v247
    %341 = vmatpush.msra.mxu0 %v245
    %342 = vmatpush.msra.mxu0 %v243
    %343 = vmatpush.msra.mxu0 %v241
    %344 = vmatpush.msra.mxu0 %v239
    %345 = vmatmul.f32.gmra.mxu0 %v205
    %v346 = vpop.f32.mrf.mxu0
    %v347 = vadd.f32 %v327, %v346
    %348 = vdwg.mxu0
    %349 = vmatpush.msra.mxu0 %v301
    %350 = vmatpush.msra.mxu0 %v299
    %351 = vmatpush.msra.mxu0 %v297
    %352 = vmatpush.msra.mxu0 %v295
    %353 = vmatpush.msra.mxu0 %v293
    %354 = vmatpush.msra.mxu0 %v291
    %355 = vmatpush.msra.mxu0 %v289
    %356 = vmatpush.msra.mxu0 %v287
    %357 = vmatpush.msra.mxu0 %v285
    %358 = vmatpush.msra.mxu0 %v283
    %359 = vmatpush.msra.mxu0 %v281
    %360 = vmatpush.msra.mxu0 %v279
    %361 = vmatpush.msra.mxu0 %v277
    %362 = vmatpush.msra.mxu0 %v275
    %363 = vmatpush.msra.mxu0 %v273
    %364 = vmatpush.msra.mxu0 %v271
    %365 = vmatmul.f32.gmra.mxu0 %v206
    %v366 = vpop.f32.mrf.mxu0
    %v367 = vadd.f32 %v347, %v366
    %368 = vdwg.mxu0
    %369 = vmatpush.msra.mxu0 %v238
    %370 = vmatpush.msra.mxu0 %v236
    %371 = vmatpush.msra.mxu0 %v234
    %372 = vmatpush.msra.mxu0 %v232
    %373 = vmatpush.msra.mxu0 %v230
    %374 = vmatpush.msra.mxu0 %v228
    %375 = vmatpush.msra.mxu0 %v226
    %376 = vmatpush.msra.mxu0 %v224
    %377 = vmatpush.msra.mxu0 %v222
    %378 = vmatpush.msra.mxu0 %v220
    %379 = vmatpush.msra.mxu0 %v218
    %380 = vmatpush.msra.mxu0 %v216
    %381 = vmatpush.msra.mxu0 %v214
    %382 = vmatpush.msra.mxu0 %v212
    %383 = vmatpush.msra.mxu0 %v210
    %384 = vmatpush.msra.mxu0 %v208
    %385 = vmatmul.f32.gmra.mxu0 %v204
    %v386 = vpop.f32.mrf.mxu0
    %v387 = vadd.f32 %v306, %v386
    %388 = vdwg.mxu0
    %389 = vmatpush.msra.mxu0 %v270
    %390 = vmatpush.msra.mxu0 %v268
    %391 = vmatpush.msra.mxu0 %v266
    %392 = vmatpush.msra.mxu0 %v264
    %393 = vmatpush.msra.mxu0 %v262
    %394 = vmatpush.msra.mxu0 %v260
    %395 = vmatpush.msra.mxu0 %v258
    %396 = vmatpush.msra.mxu0 %v256
    %397 = vmatpush.msra.mxu0 %v254
    %398 = vmatpush.msra.mxu0 %v252
    %399 = vmatpush.msra.mxu0 %v250
    %400 = vmatpush.msra.mxu0 %v248
    %401 = vmatpush.msra.mxu0 %v246
    %402 = vmatpush.msra.mxu0 %v244
    %403 = vmatpush.msra.mxu0 %v242
    %404 = vmatpush.msra.mxu0 %v240
    %405 = vmatmul.f32.gmra.mxu0 %v205
    %v406 = vpop.f32.mrf.mxu0
    %v407 = vadd.f32 %v387, %v406
    %408 = vdwg.mxu0
    %409 = vmatpush.msra.mxu0 %v302
    %410 = vmatpush.msra.mxu0 %v300
    %411 = vmatpush.msra.mxu0 %v298
    %412 = vmatpush.msra.mxu0 %v296
    %413 = vmatpush.msra.mxu0 %v294
    %414 = vmatpush.msra.mxu0 %v292
    %415 = vmatpush.msra.mxu0 %v290
    %416 = vmatpush.msra.mxu0 %v288
    %417 = vmatpush.msra.mxu0 %v286
    %418 = vmatpush.msra.mxu0 %v284
    %419 = vmatpush.msra.mxu0 %v282
    %420 = vmatpush.msra.mxu0 %v280
    %421 = vmatpush.msra.mxu0 %v278
    %422 = vmatpush.msra.mxu0 %v276
    %423 = vmatpush.msra.mxu0 %v274
    %424 = vmatpush.msra.mxu0 %v272
    %425 = vmatmul.f32.gmra.mxu0 %v206
    %v426 = vpop.f32.mrf.mxu0
    %v427 = vadd.f32 %v407, %v426
    %428 = vdwg.mxu0
    %v429 = vmax.f32 %v367, 0.0
    %v430 = vmax.f32 %v427, 0.0
    %v431 = vld [vmem:[#allocation10] sm:$0xff]
    %v432 = vld [vmem:[#allocation10 + $0x8] sm:$0xff]
    %v433 = vld [vmem:[#allocation10 + $0x10] sm:$0xff]
    %v434 = vld [vmem:[#allocation10 + $0x18] sm:$0xff]
    %v435 = vld [vmem:[#allocation10 + $0x20] sm:$0xff]
    %v436 = vld [vmem:[#allocation10 + $0x28] sm:$0xff]
    %v437 = vld [vmem:[#allocation10 + $0x30] sm:$0xff]
    %v438 = vld [vmem:[#allocation10 + $0x38] sm:$0xff]
    %v439 = vld [vmem:[#allocation10 + $0x40] sm:$0xff]
    %v440 = vld [vmem:[#allocation10 + $0x48] sm:$0xff]
    %v441 = vld [vmem:[#allocation10 + $0x50] sm:$0xff]
    %v442 = vld [vmem:[#allocation10 + $0x58] sm:$0xff]
    %v443 = vld [vmem:[#allocation10 + $0x60] sm:$0xff]
    %v444 = vld [vmem:[#allocation10 + $0x68] sm:$0xff]
    %v445 = vld [vmem:[#allocation10 + $0x70] sm:$0xff]
    %v446 = vld [vmem:[#allocation10 + $0x78] sm:$0xff]
    %v447 = vld [vmem:[#allocation10 + $0x80] sm:$0xff]
    %v448 = vld [vmem:[#allocation10 + $0x88] sm:$0xff]
    %v449 = vld [vmem:[#allocation10 + $0x90] sm:$0xff]
    %v450 = vld [vmem:[#allocation10 + $0x98] sm:$0xff]
    %v451 = vld [vmem:[#allocation10 + $0xa0] sm:$0xff]
    %v452 = vld [vmem:[#allocation10 + $0xa8] sm:$0xff]
    %v453 = vld [vmem:[#allocation10 + $0xb0] sm:$0xff]
    %v454 = vld [vmem:[#allocation10 + $0xb8] sm:$0xff]
    %v455 = vld [vmem:[#allocation10 + $0xc0] sm:$0xff]
    %v456 = vld [vmem:[#allocation10 + $0xc8] sm:$0xff]
    %v457 = vld [vmem:[#allocation10 + $0xd0] sm:$0xff]
    %v458 = vld [vmem:[#allocation10 + $0xd8] sm:$0xff]
    %v459 = vld [vmem:[#allocation10 + $0xe0] sm:$0xff]
    %v460 = vld [vmem:[#allocation10 + $0xe8] sm:$0xff]
    %v461 = vld [vmem:[#allocation10 + $0xf0] sm:$0xff]
    %v462 = vld [vmem:[#allocation10 + $0xf8] sm:$0xff]
    %v463 = vld [vmem:[%s6] sm:$0x1]
    %v465 = vperm.slane %v463, 0
    %467 = vmatpush.msra.mxu0 %v446
    %468 = vmatpush.msra.mxu0 %v445
    %469 = vmatpush.msra.mxu0 %v444
    %470 = vmatpush.msra.mxu0 %v443
    %471 = vmatpush.msra.mxu0 %v442
    %472 = vmatpush.msra.mxu0 %v441
    %473 = vmatpush.msra.mxu0 %v440
    %474 = vmatpush.msra.mxu0 %v439
    %475 = vmatpush.msra.mxu0 %v438
    %476 = vmatpush.msra.mxu0 %v437
    %477 = vmatpush.msra.mxu0 %v436
    %478 = vmatpush.msra.mxu0 %v435
    %479 = vmatpush.msra.mxu0 %v434
    %480 = vmatpush.msra.mxu0 %v433
    %481 = vmatpush.msra.mxu0 %v432
    %482 = vmatpush.msra.mxu0 %v431
    %483 = vmatmul.f32.gmra.mxu0 %v429
    %v484 = vpop.f32.mrf.mxu0
    %v485 = vadd.f32 %v465, %v484
    %486 = vdwg.mxu0
    %487 = vmatpush.msra.mxu0 %v462
    %488 = vmatpush.msra.mxu0 %v461
    %489 = vmatpush.msra.mxu0 %v460
    %490 = vmatpush.msra.mxu0 %v459
    %491 = vmatpush.msra.mxu0 %v458
    %492 = vmatpush.msra.mxu0 %v457
    %493 = vmatpush.msra.mxu0 %v456
    %494 = vmatpush.msra.mxu0 %v455
    %495 = vmatpush.msra.mxu0 %v454
    %496 = vmatpush.msra.mxu0 %v453
    %497 = vmatpush.msra.mxu0 %v452
    %498 = vmatpush.msra.mxu0 %v451
    %499 = vmatpush.msra.mxu0 %v450
    %500 = vmatpush.msra.mxu0 %v449
    %501 = vmatpush.msra.mxu0 %v448
    %502 = vmatpush.msra.mxu0 %v447
    %503 = vmatmul.f32.gmra.mxu0 %v430
    %v504 = vpop.f32.mrf.mxu0
    %v505 = vadd.f32 %v485, %v504
    %506 = vdwg.mxu0
    %v507 = vmax.f32 %v505, 0.0
    %v508 = vld [vmem:[#allocation11] sm:$0xff]
    %v509 = vld [vmem:[#allocation11 + $0x8] sm:$0xff]
    %v510 = vld [vmem:[#allocation11 + $0x10] sm:$0xff]
    %v511 = vld [vmem:[#allocation11 + $0x18] sm:$0xff]
    %v512 = vld [vmem:[#allocation11 + $0x20] sm:$0xff]
    %v513 = vld [vmem:[#allocation11 + $0x28] sm:$0xff]
    %v514 = vld [vmem:[#allocation11 + $0x30] sm:$0xff]
    %v515 = vld [vmem:[#allocation11 + $0x38] sm:$0xff]
    %v516 = vld [vmem:[#allocation11 + $0x40] sm:$0xff]
    %v517 = vld [vmem:[#allocation11 + $0x48] sm:$0xff]
    %v518 = vld [vmem:[#allocation11 + $0x50] sm:$0xff]
    %v519 = vld [vmem:[#allocation11 + $0x58] sm:$0xff]
    %v520 = vld [vmem:[#allocation11 + $0x60] sm:$0xff]
    %v521 = vld [vmem:[#allocation11 + $0x68] sm:$0xff]
    %v522 = vld [vmem:[#allocation11 + $0x70] sm:$0xff]
    %v523 = vld [vmem:[#allocation11 + $0x78] sm:$0xff]
    %v524 = vld [vmem:[%s8] sm:$0x1]
    %v526 = vperm.slane %v524, 0
    %528 = vmatpush.msra.mxu0 %v523
    %529 = vmatpush.msra.mxu0 %v522
    %530 = vmatpush.msra.mxu0 %v521
    %531 = vmatpush.msra.mxu0 %v520
    %532 = vmatpush.msra.mxu0 %v519
    %533 = vmatpush.msra.mxu0 %v518
    %534 = vmatpush.msra.mxu0 %v517
    %535 = vmatpush.msra.mxu0 %v516
    %536 = vmatpush.msra.mxu0 %v515
    %537 = vmatpush.msra.mxu0 %v514
    %538 = vmatpush.msra.mxu0 %v513
    %539 = vmatpush.msra.mxu0 %v512
    %540 = vmatpush.msra.mxu0 %v511
    %541 = vmatpush.msra.mxu0 %v510
    %542 = vmatpush.msra.mxu0 %v509
    %543 = vmatpush.msra.mxu0 %v508
    %544 = vmatmul.f32.gmra.mxu0 %v507
    %v545 = vpop.f32.mrf.mxu0
    %v546 = vadd.f32 %v526, %v545
    %547 = vdwg.mxu0
    %548 = vst [vmem:[#allocation13] sm:$0xff] %v546
    // Predicated region
    $region62: #{tpu_custom_call.1} parent=1 // pred_check
      _
    $region63: #{tpu_custom_call.1} parent=1 // pred_check_branch
      %550 = sbr.rel (0) target = $region65
    $region64: #{tpu_custom_call.1} parent=1 // pred_region
      %552 = vsyncadd [#allocation4], 96
      %s553 = sshll.u32 [#allocation13], 4
      %s554 = int_to_ptr.vmem [resolvable:$true] %s553
      %s555 = sshll.u32 %s9, 4
      %s556 = int_to_ptr.hbm [resolvable:$true] %s555
      %561 = dma.vmem_to_hbm [thread:$0]  %s554, 32, %s556, [#allocation4], 32, 32, 2
    $region65: #{tpu_custom_call.1} parent=1 // pred_fallthru
      _
    // Predicated region
    $region66: #{tpu_custom_call.1} parent=1 // pred_check
      _
    $region67: #{tpu_custom_call.1} parent=1 // pred_check_branch
      %563 = sbr.rel (0) target = $region69
    $region68: #{tpu_custom_call.1} parent=1 // pred_region
      %565 = dma.done [#allocation4], 128
    $region69: #{tpu_custom_call.1} parent=1 // pred_fallthru
      _
    %566 = vsyncpa [#allocation3], 1
    %567 = vsyncpa [#allocation6], 1
    %568 = vsyncpa [#allocation9], 1
    %569 = vsyncpa [#allocation12], 1
    %570 = vsyncpa [#allocation4], 1

</llo_original>
